<compile_context>
chip_gen: v6e
topology: v6e:2x2x1
jax: 0.10.0
libtpu: 0.0.40
codegen_flags: <defaults>
</compile_context>

<pallas_src>
import jax
import jax.numpy as jnp
from jax.experimental import pallas as pl
from jax.experimental.pallas import tpu as pltpu


def _sinusoidal_kernel(pos_ref, inv_ref, phase_ref, group_ref, out_ref):
    # pos_ref:   (TN, rpl) f32   packed positions (rpl logical rows per slab row)
    # inv_ref:   (1, W)    f32   1000 ** (-(j % length) / length), tiled rpl times
    # phase_ref: (1, W)    f32   0 for even j, pi/2 for odd j, tiled rpl times
    # group_ref: (1, W)    i32   lane // length  (which packed column the lane uses)
    # out_ref:   (TN, W)   f32
    tn, w = out_ref.shape
    rpl = pos_ref.shape[1]

    pos = pos_ref[...]
    group = group_ref[...]

    # Expand the packed positions across lane groups: rpl-1 cheap selects
    # (rpl == 1 means the output is already row-per-row; no selects at all).
    p = jnp.broadcast_to(pos[:, 0:1], (tn, w))
    for k in range(1, rpl):
        p = jnp.where(group == k, pos[:, k : k + 1], p)

    # One FMA + one sin per element; cos(x) = sin(x + pi/2).
    out_ref[...] = jnp.sin(p * inv_ref[...] + phase_ref[...])


def sinusoidal(position: jax.Array, length: int) -> jax.Array:
    """position: (n,) array; returns (n, 1, length) float32."""
    n = position.shape[0]
    pos = position.astype(jnp.float32)

    # ---- row-invariant per-column terms, computed once in plain JAX ----
    j = jnp.arange(length, dtype=jnp.float32)
    inv_denom = jnp.exp(-(j / jnp.float32(length)) * jnp.log(jnp.float32(1000.0)))
    phase = jnp.where(jnp.arange(length) % 2 == 1,
                      jnp.float32(jnp.pi / 2.0), jnp.float32(0.0))

    # ---- lane-dense packing: rpl logical rows per 128-lane slab row ----
    if length < 128 and 128 % length == 0 and n % (128 // length) == 0:
        rpl = 128 // length
    else:
        rpl = 1
    w = rpl * length
    n_packed = n // rpl

    pos_packed = pos.reshape(n_packed, rpl)
    inv_row = jnp.tile(inv_denom, rpl).reshape(1, w)
    phase_row = jnp.tile(phase, rpl).reshape(1, w)
    group_row = (jnp.arange(w, dtype=jnp.int32) // length).reshape(1, w)

    # ---- row tiling: ~4 MiB f32 output tile (double-buffered ~8 MiB),
    #      multiple of 8 rows (or the full extent for small inputs) ----
    max_rows = max(8, ((4 * 1024 * 1024) // (w * 4)) // 8 * 8)
    tn = n_packed if n_packed <= max_rows else max_rows
    grid = (pl.cdiv(n_packed, tn),)

    out = pl.pallas_call(
        _sinusoidal_kernel,
        out_shape=jax.ShapeDtypeStruct((n_packed, w), jnp.float32),
        grid=grid,
        in_specs=[
            pl.BlockSpec((tn, rpl), lambda i: (i, 0)),   # positions (tiled over rows)
            pl.BlockSpec((1, w), lambda i: (0, 0)),      # inv_denom  (constant)
            pl.BlockSpec((1, w), lambda i: (0, 0)),      # phase      (constant)
            pl.BlockSpec((1, w), lambda i: (0, 0)),      # lane group (constant)
        ],
        out_specs=pl.BlockSpec((tn, w), lambda i: (i, 0)),
        compiler_params=pltpu.CompilerParams(
            dimension_semantics=("parallel",)),
    )(pos_packed, inv_row, phase_row, group_row)

    # (n_packed, w) row-major is bit-identical to (n, length) row-major.
    return out.reshape(n, 1, length)


def _reference(position, length):
    # pure-JAX reference mirroring the PyTorch module
    n = position.shape[0]
    pos = position.astype(jnp.float32).reshape(n, 1)
    j = jnp.arange(length, dtype=jnp.float32)[None, :]
    angle = pos / jnp.power(jnp.float32(1000.0), j / jnp.float32(length))
    out = jnp.where((jnp.arange(length) % 2 == 0)[None, :],
                    jnp.sin(angle), jnp.cos(angle))
    return out.reshape(n, 1, length)


if __name__ == "__main__":
    key = jax.random.PRNGKey(0)
    # (n, length) cases: lane-dense packed path, already-lane-dense path,
    # and the generic (length not a divisor of 128) fallback path.
    cases = [(8, 32), (8, 128), (6, 20)]
    for idx, (n, length) in enumerate(cases):
        k = jax.random.fold_in(key, idx)
        position = jax.random.uniform(k, (n,), dtype=jnp.float32) * 100.0

        result = jax.block_until_ready(sinusoidal(position, length))
        ref = _reference(position, length)

        assert result.shape == (n, 1, length), result.shape
        assert jnp.allclose(result, ref, atol=2e-4, rtol=2e-4), (
            f"mismatch vs reference for n={n}, length={length}")

    print("KERNEL_OK")
</pallas_src>

<mosaic_0001>
module attributes {stable_mosaic.version = 11 : i64} {
  func.func @_sinusoidal_kernel(%arg0: i32, %arg1: memref<2x4xf32, #tpu.memory_space<vmem>>, %arg2: memref<1x128xf32, #tpu.memory_space<vmem>>, %arg3: memref<1x128xf32, #tpu.memory_space<vmem>>, %arg4: memref<1x128xi32, #tpu.memory_space<vmem>>, %arg5: memref<2x128xf32, #tpu.memory_space<vmem>>) attributes {dimension_semantics = [#tpu.dimension_semantics<parallel>], iteration_bounds = array<i64: 1>, scalar_prefetch = 0 : i64, scratch_operands = 0 : i64, tpu.core_type = #tpu.core_type<tc>, window_params = [{transform_indices = @transform_0, window_bounds = array<i64: 2, 4>}, {pipeline_mode = #tpu.pipeline_mode<synchronous>, transform_indices = @transform_1, window_bounds = array<i64: 1, 128>}, {pipeline_mode = #tpu.pipeline_mode<synchronous>, transform_indices = @transform_2, window_bounds = array<i64: 1, 128>}, {pipeline_mode = #tpu.pipeline_mode<synchronous>, transform_indices = @transform_3, window_bounds = array<i64: 1, 128>}, {transform_indices = @transform_4, window_bounds = array<i64: 2, 128>}]} {
    %c0 = arith.constant 0 : index
    %c0_0 = arith.constant 0 : index
    %0 = vector.load %arg1[%c0, %c0_0] : memref<2x4xf32, #tpu.memory_space<vmem>>, vector<2x4xf32>
    %c0_1 = arith.constant 0 : index
    %c0_2 = arith.constant 0 : index
    %1 = vector.load %arg4[%c0_1, %c0_2] : memref<1x128xi32, #tpu.memory_space<vmem>>, vector<1x128xi32>
    %2 = vector.extract_strided_slice %0 {offsets = [0, 0], sizes = [2, 1], strides = [1, 1]} : vector<2x4xf32> to vector<2x1xf32>
    %3 = vector.shape_cast %2 : vector<2x1xf32> to vector<2x1xf32>
    %4 = vector.broadcast %3 : vector<2x1xf32> to vector<2x128xf32>
    %c1_i32 = arith.constant 1 : i32
    %5 = vector.broadcast %c1_i32 : i32 to vector<1x128xi32>
    %6 = arith.cmpi eq, %1, %5 : vector<1x128xi32>
    %7 = vector.extract_strided_slice %0 {offsets = [0, 1], sizes = [2, 1], strides = [1, 1]} : vector<2x4xf32> to vector<2x1xf32>
    %8 = vector.shape_cast %6 : vector<1x128xi1> to vector<1x128xi1>
    %9 = vector.broadcast %8 : vector<1x128xi1> to vector<2x128xi1>
    %10 = vector.shape_cast %7 : vector<2x1xf32> to vector<2x1xf32>
    %11 = vector.broadcast %10 : vector<2x1xf32> to vector<2x128xf32>
    %12 = arith.select %9, %11, %4 : vector<2x128xi1>, vector<2x128xf32>
    %c2_i32 = arith.constant 2 : i32
    %13 = vector.broadcast %c2_i32 : i32 to vector<1x128xi32>
    %14 = arith.cmpi eq, %1, %13 : vector<1x128xi32>
    %15 = vector.extract_strided_slice %0 {offsets = [0, 2], sizes = [2, 1], strides = [1, 1]} : vector<2x4xf32> to vector<2x1xf32>
    %16 = vector.shape_cast %14 : vector<1x128xi1> to vector<1x128xi1>
    %17 = vector.broadcast %16 : vector<1x128xi1> to vector<2x128xi1>
    %18 = vector.shape_cast %15 : vector<2x1xf32> to vector<2x1xf32>
    %19 = vector.broadcast %18 : vector<2x1xf32> to vector<2x128xf32>
    %20 = arith.select %17, %19, %12 : vector<2x128xi1>, vector<2x128xf32>
    %c3_i32 = arith.constant 3 : i32
    %21 = vector.broadcast %c3_i32 : i32 to vector<1x128xi32>
    %22 = arith.cmpi eq, %1, %21 : vector<1x128xi32>
    %23 = vector.extract_strided_slice %0 {offsets = [0, 3], sizes = [2, 1], strides = [1, 1]} : vector<2x4xf32> to vector<2x1xf32>
    %24 = vector.shape_cast %22 : vector<1x128xi1> to vector<1x128xi1>
    %25 = vector.broadcast %24 : vector<1x128xi1> to vector<2x128xi1>
    %26 = vector.shape_cast %23 : vector<2x1xf32> to vector<2x1xf32>
    %27 = vector.broadcast %26 : vector<2x1xf32> to vector<2x128xf32>
    %28 = arith.select %25, %27, %20 : vector<2x128xi1>, vector<2x128xf32>
    %c0_3 = arith.constant 0 : index
    %c0_4 = arith.constant 0 : index
    %29 = vector.load %arg2[%c0_3, %c0_4] : memref<1x128xf32, #tpu.memory_space<vmem>>, vector<1x128xf32>
    %30 = vector.broadcast %29 : vector<1x128xf32> to vector<2x128xf32>
    %31 = arith.mulf %28, %30 : vector<2x128xf32>
    %c0_5 = arith.constant 0 : index
    %c0_6 = arith.constant 0 : index
    %32 = vector.load %arg3[%c0_5, %c0_6] : memref<1x128xf32, #tpu.memory_space<vmem>>, vector<1x128xf32>
    %33 = vector.broadcast %32 : vector<1x128xf32> to vector<2x128xf32>
    %34 = arith.addf %31, %33 : vector<2x128xf32>
    %35 = math.sin %34 : vector<2x128xf32>
    %c0_7 = arith.constant 0 : index
    %c0_8 = arith.constant 0 : index
    %36 = vector.load %arg5[%c0_7, %c0_8] : memref<2x128xf32, #tpu.memory_space<vmem>>, vector<2x128xf32>
    tpu.vector_store %arg5[%c0_7, %c0_8], %35 {strides = array<i32>} : memref<2x128xf32, #tpu.memory_space<vmem>>, vector<2x128xf32>,
    return
  }
  func.func @transform_0(%arg0: i32) -> (i32, i32) {
    %c0_i32 = arith.constant 0 : i32
    %c0_i32_0 = arith.constant 0 : i32
    return %arg0, %c0_i32 : i32, i32
  }
  func.func @transform_1(%arg0: i32) -> (i32, i32) {
    %c0_i32 = arith.constant 0 : i32
    %c0_i32_0 = arith.constant 0 : i32
    %c0_i32_1 = arith.constant 0 : i32
    return %c0_i32, %c0_i32_0 : i32, i32
  }
  func.func @transform_2(%arg0: i32) -> (i32, i32) {
    %c0_i32 = arith.constant 0 : i32
    %c0_i32_0 = arith.constant 0 : i32
    %c0_i32_1 = arith.constant 0 : i32
    return %c0_i32, %c0_i32_0 : i32, i32
  }
  func.func @transform_3(%arg0: i32) -> (i32, i32) {
    %c0_i32 = arith.constant 0 : i32
    %c0_i32_0 = arith.constant 0 : i32
    %c0_i32_1 = arith.constant 0 : i32
    return %c0_i32, %c0_i32_0 : i32, i32
  }
  func.func @transform_4(%arg0: i32) -> (i32, i32) {
    %c0_i32 = arith.constant 0 : i32
    %c0_i32_0 = arith.constant 0 : i32
    return %arg0, %c0_i32 : i32, i32
  }
}

</mosaic_0001>

<llo_original>
// kernel: tpu_custom_call.1
$region0: #{tpu_custom_call.1}
  #allocation0 [shape = 'u32[]', space=smem, size = 0x4, offset = 0x4, fixed_abs, tag = 'smem constant byte address 0x4 - core index']
  #allocation1 [shape = 'u32[144,128]{1,0:T(1,128)}', space=vmem, size = 0x12000, scoped, tag = 'internal scratch']
  %s0 = inlined_call_operand.hbm [shape: f32[2,4], index: 0, kind: input, shape index: {}]
  %s1 = inlined_call_operand.vmem [shape: f32[1,128], index: 1, kind: input, shape index: {}]
  %s2 = inlined_call_operand.vmem [shape: f32[1,128], index: 2, kind: input, shape index: {}]
  %s3 = inlined_call_operand.vmem [shape: s32[1,128], index: 3, kind: input, shape index: {}]
  %s4 = inlined_call_operand.hbm [shape: f32[2,128], index: 4, kind: output, shape index: {}]
  %s5 = sld [smem:[#allocation0]]
  $region30: #{tpu_custom_call.1} parent=0
    _
  %s7 = ssub.s32 1, %s5
  %s8 = scalar_select 0, %s7, %s5
  $region1: #{tpu_custom_call.1} parent=0
    #allocation2 [shape = 'u8[1024]{0}', space=vmem, size = 0x400, scoped, tag = 'input window, operand 0, single buffered']
    #allocation3 [shape = 's32[1]{0}', space=sflag, size = 0x4, scoped, tag = 'scoped memory for tpu_custom_call.1']
    #allocation4 [shape = 's32[1]{0}', space=sflag, size = 0x4, scoped, tag = 'scoped memory for tpu_custom_call.1']
    #allocation5 [shape = 'u8[1024]{0}', space=vmem, size = 0x400, scoped, tag = 'output window, operand 0, single buffered']
    %9 = vsyncpa [#allocation3], 0
    %10 = vsyncpa [#allocation4], 0
    // Predicated region
    $region2: #{tpu_custom_call.1} parent=1 // pred_check
      _
    $region3: #{tpu_custom_call.1} parent=1 // pred_check_branch
      %12 = sbr.rel (0) target = $region5
    $region4: #{tpu_custom_call.1} parent=1 // pred_region
      %s14 = ssub.s32 32, 32
      %15 = vsyncadd [#allocation3], %s14
      %s17 = sshll.u32 [#allocation2], 4
      %s18 = int_to_ptr.vmem [resolvable:$true] %s17
      %20 = dma.hbm_to_vmem [thread:$0]  %s0, 32, %s18, [#allocation3]
    $region5: #{tpu_custom_call.1} parent=1 // pred_fallthru
      _
    // Predicated region
    $region6: #{tpu_custom_call.1} parent=1 // pred_check
      _
    $region7: #{tpu_custom_call.1} parent=1 // pred_check_branch
      %22 = sbr.rel (0) target = $region9
    $region8: #{tpu_custom_call.1} parent=1 // pred_region
      _
    $region9: #{tpu_custom_call.1} parent=1 // pred_fallthru
      _
    // Predicated region
    $region10: #{tpu_custom_call.1} parent=1 // pred_check
      _
    $region11: #{tpu_custom_call.1} parent=1 // pred_check_branch
      %24 = sbr.rel (0) target = $region13
    $region12: #{tpu_custom_call.1} parent=1 // pred_region
      _
    $region13: #{tpu_custom_call.1} parent=1 // pred_fallthru
      _
    // Predicated region
    $region14: #{tpu_custom_call.1} parent=1 // pred_check
      _
    $region15: #{tpu_custom_call.1} parent=1 // pred_check_branch
      %26 = sbr.rel (0) target = $region17
    $region16: #{tpu_custom_call.1} parent=1 // pred_region
      _
    $region17: #{tpu_custom_call.1} parent=1 // pred_fallthru
      _
    // Predicated region
    $region18: #{tpu_custom_call.1} parent=1 // pred_check
      _
    $region19: #{tpu_custom_call.1} parent=1 // pred_check_branch
      %28 = sbr.rel (0) target = $region21
    $region20: #{tpu_custom_call.1} parent=1 // pred_region
      %29 = dma.done [#allocation3], 32
    $region21: #{tpu_custom_call.1} parent=1 // pred_fallthru
      _
    %v30 = vld [vmem:[#allocation2] sm:$0x3]
    %v31 = vld [vmem:[%s3] sm:$0x1]
    %33 = vset.pattern.permute.xlu0 0
    %34 = vperm.xlu0 %33, %v30
    %v35 = vpop.permute.xlu0 %34
    %vm37 = vcmp.eq.s32.totalorder %v31, 1
    %v38 = vsel %vm37, 1, 0
    %v39 = vlaneseq
    %v40 = vshrl.u32 %v39, 7
    %v41 = vsub.s32 0, %v40
    %v42 = vrot.slane %v38, %v41
    %vm43 = vcmp.eq.s32.totalorder %v42, 1
    %44 = vset.pattern.permute.xlu0 1
    %45 = vperm.xlu0 %44, %v30
    %v46 = vpop.permute.xlu0 %45
    %v48 = vsel %vm43, %v46, %v35
    %vm49 = vcmp.eq.s32.totalorder %v31, 2
    %v50 = vsel %vm49, 1, 0
    %v51 = vlaneseq
    %v52 = vshrl.u32 %v51, 7
    %v53 = vsub.s32 0, %v52
    %v54 = vrot.slane %v50, %v53
    %vm55 = vcmp.eq.s32.totalorder %v54, 1
    %56 = vset.pattern.permute.xlu0 2
    %57 = vperm.xlu0 %56, %v30
    %v58 = vpop.permute.xlu0 %57
    %v60 = vsel %vm55, %v58, %v48
    %vm61 = vcmp.eq.s32.totalorder %v31, 3
    %v62 = vsel %vm61, 1, 0
    %v63 = vlaneseq
    %v64 = vshrl.u32 %v63, 7
    %v65 = vsub.s32 0, %v64
    %v66 = vrot.slane %v62, %v65
    %vm67 = vcmp.eq.s32.totalorder %v66, 1
    %68 = vset.pattern.permute.xlu0 3
    %69 = vperm.xlu0 %68, %v30
    %v70 = vpop.permute.xlu0 %69
    %v72 = vsel %vm67, %v70, %v60
    %v73 = vld [vmem:[%s1] sm:$0x1]
    %v75 = vlaneseq
    %v76 = vshrl.u32 %v75, 7
    %v77 = vsub.s32 0, %v76
    %v78 = vrot.slane %v73, %v77
    %v80 = vmul.f32 %v72, %v78
    %v81 = vld [vmem:[%s2] sm:$0x1]
    %v83 = vlaneseq
    %v84 = vshrl.u32 %v83, 7
    %v85 = vsub.s32 0, %v84
    %v86 = vrot.slane %v81, %v85
    %v88 = vadd.f32 %v80, %v86
    %v89 = vand.u32 2147483647, %v88
    %vm90 = vcmp.le.f32.partialorder %v89, 0.7853982
    %vm91 = vcmp.lt.s32.totalorder %v88, 0
    %v92 = vand.u32 %v88, 2139095040
    %v93 = vshrl.u32 %v92, 23
    %v94 = vsub.s32 %v93, 127
    %v95 = vand.u32 2147483647, %v88
    %v96 = vand.u32 %v95, 8388607
    %v97 = vor.u32 %v96, 8388608
    %v98 = vsub.s32 0, %v97
    %v99 = vadd.s32 %v94, 1
    %vm100 = vcmp.gt.s32.totalorder %v99, 0
    %v101 = vsel %vm100, %v99, 0
    %v102 = vshrl.u32 %v101, 5
    %v103 = vand.u32 %v101, 31
    %v104 = vsub.s32 32, %v103
    %v105 = vshrl.u32 683565275, %v104
    %v106 = vshll.u32 683565275, %v103
    %v107 = vshrl.u32 2475754826, %v104
    %v108 = vor.u32 %v106, %v107
    %v109 = vshll.u32 2475754826, %v103
    %v110 = vshrl.u32 2131351028, %v104
    %v111 = vor.u32 %v109, %v110
    %v112 = vshll.u32 2131351028, %v103
    %v113 = vshrl.u32 2102212464, %v104
    %v114 = vor.u32 %v112, %v113
    %v115 = vshll.u32 2102212464, %v103
    %v116 = vshrl.u32 920167782, %v104
    %v117 = vor.u32 %v115, %v116
    %v118 = vshll.u32 920167782, %v103
    %v119 = vshrl.u32 1326507024, %v104
    %v120 = vor.u32 %v118, %v119
    %vm121 = vcmp.lt.s32.totalorder %v102, 1
    %vm122 = vcmp.lt.s32.totalorder %v102, 2
    %vm123 = vcmp.lt.s32.totalorder %v102, 3
    %vm124 = vcmp.lt.s32.totalorder %v102, 4
    %v125 = vsel %vm121, %v105, %v108
    %v126 = vsel %vm124, %v114, 2102212464
    %v127 = vsel %vm123, %v111, %v126
    %v128 = vsel %vm122, %v125, %v127
    %v129 = vsel %vm121, %v108, %v111
    %v130 = vsel %vm124, %v117, 920167782
    %v131 = vsel %vm123, %v114, %v130
    %v132 = vsel %vm122, %v129, %v131
    %v133 = vsel %vm121, %v111, %v114
    %v134 = vsel %vm124, %v120, 1326507024
    %v135 = vsel %vm123, %v117, %v134
    %v136 = vsel %vm122, %v133, %v135
    %v137 = vshll.u32 %v97, 8
    %v138 = vmul.u32.u64.compose %v137, %v136
    %v139 = vextract.low.u32 %v138
    %v140 = vextract.high.u32 %v138
    %v141 = vmul.u32.u64.compose %v137, %v132
    %v142 = vextract.low.u32 %v141
    %v143 = vextract.high.u32 %v141
    %v144 = vmul.u32 %v137, %v128
    %v145 = vadd.s32 %v140, %v142
    %vm146 = vc.u32 %v140, %v142
    %v147 = vadd.s32 %v143, 1
    %v148 = vsel %vm146, %v147, %v143
    %v149 = vadd.s32 %v144, %v148
    %v150 = vadd.s32 %v149, 536870912
    %v151 = vshrl.u32 %v150, 30
    %v152 = vshll.u32 %v151, 30
    %v153 = vsub.s32 %v149, %v152
    %vm154 = vcmp.lt.s32.totalorder %v153, 0
    %v155 = vsub.s32 0, %v153
    %v156 = vsel %vm154, %v155, %v153
    %v157 = vclz %v156
    %v158 = vsub.s32 %v157, 2
    %vm159 = vcmp.gt.s32.totalorder 0, %v158
    %v160 = vsel %vm159, 0, %v158
    %v161 = vsub.s32 32, %v160
    %v162 = vshll.u32 %v153, %v160
    %v163 = vshrl.u32 %v145, %v161
    %v164 = vor.u32 %v162, %v163
    %v165 = vsub.s32 4294967266, %v160
    %v166 = vadd.s32 %v165, 127
    %v167 = vshll.u32 %v166, 23
    %v168 = vor.u32 4788187, %v167
    %v169 = vand.u32 2147483647, %v168
    %v171 = vcvt.s32.f32 %v164
    %v172 = vmul.f32 %v171, %v169
    %v173 = vxor.u32 %v172, 2147483648
    %v174 = vsel %vm91, %v173, %v172
    %v175 = vsub.s32 4, %v151
    %v176 = vsel %vm91, %v175, %v151
    %v177 = vsel %vm90, %v88, %v174
    %v178 = vsel %vm90, 0, %v176
    %v179 = vcosq.f32.pop %v177
    %v180 = vsinq.f32.pop %v177
    %vm181 = vweird.f32 %v88
    %v182 = vadd.s32 %v178, 3
    %v183 = vand.u32 %v182, 3
    %vm184 = vcmp.lt.s32.totalorder %v183, 2
    %vm185 = vcmp.eq.s32.totalorder %v183, 0
    %v186 = vxor.u32 %v180, 2147483648
    %v187 = vsel %vm185, %v179, %v186
    %vm188 = vcmp.eq.s32.totalorder %v183, 2
    %v189 = vxor.u32 %v179, 2147483648
    %v190 = vsel %vm188, %v189, %v180
    %v191 = vsel %vm184, %v187, %v190
    %v192 = vsel %vm181, nan, %v191
    %193 = vst [vmem:[#allocation5] sm:$0x3] %v192
    // Predicated region
    $region22: #{tpu_custom_call.1} parent=1 // pred_check
      _
    $region23: #{tpu_custom_call.1} parent=1 // pred_check_branch
      %195 = sbr.rel (0) target = $region25
    $region24: #{tpu_custom_call.1} parent=1 // pred_region
      %s197 = ssub.s32 32, 32
      %198 = vsyncadd [#allocation4], %s197
      %s200 = sshll.u32 [#allocation5], 4
      %s201 = int_to_ptr.vmem [resolvable:$true] %s200
      %203 = dma.vmem_to_hbm [thread:$0]  %s201, 32, %s4, [#allocation4]
    $region25: #{tpu_custom_call.1} parent=1 // pred_fallthru
      _
    // Predicated region
    $region26: #{tpu_custom_call.1} parent=1 // pred_check
      _
    $region27: #{tpu_custom_call.1} parent=1 // pred_check_branch
      %205 = sbr.rel (0) target = $region29
    $region28: #{tpu_custom_call.1} parent=1 // pred_region
      %206 = dma.done [#allocation4], 32
    $region29: #{tpu_custom_call.1} parent=1 // pred_fallthru
      _
    %207 = vsyncpa [#allocation3], 1
    %208 = vsyncpa [#allocation4], 1

</llo_original>
